<compile_context>
chip_gen: v7x
topology: tpu7x:2x2x1
jax: 0.10.0
libtpu: 0.0.40
codegen_flags: <defaults>
</compile_context>

<pallas_src>
import functools

import jax
import jax.numpy as jnp
from jax.experimental import pallas as pl
from jax.experimental.pallas import tpu as pltpu


def _round_up_128(v):
    return ((v + 127) // 128) * 128


def _ppo_fused_kernel(x_ref, w0_ref, w1_ref, w2_ref, w3_ref, w4_ref, b_ref,
                      out_ref, xpad_ref, *, obs_dim):
    """Whole PPONetwork forward for one batch tile.

    x_ref    : (bt, obs_dim)  f32   unpadded observations
    w*_ref   : (in_pad_i, out_pad_i) per-layer weights (bf16 or f32)
    b_ref    : (8, Pb)        f32   row i = bias of layer i (zero padded)
    out_ref  : (bt, out_pad)  f32   [policy_logits | value | 0-pad]
    xpad_ref : (bt, in_pad)   f32   scratch: lane-padded input activation
    """
    in_pad = xpad_ref.shape[-1]
    if obs_dim < in_pad:
        # Pad the observation to a full 128-lane activation inside VMEM
        # (avoids a wrapper-side padded HBM array and its extra DMA traffic).
        xpad_ref[...] = jnp.zeros_like(xpad_ref)
        xpad_ref[:, 0:obs_dim] = x_ref[...].astype(jnp.float32)
    else:
        xpad_ref[...] = x_ref[...].astype(jnp.float32)
    h = xpad_ref[...]

    w_refs = (w0_ref, w1_ref, w2_ref, w3_ref, w4_ref)
    for i, w_ref in enumerate(w_refs):
        out_w = w_ref.shape[-1]
        # MXU operands in the packed weight dtype (bf16 by default), f32
        # accumulation; bias-add / ReLU stay in f32 (v5e-friendly).
        acc = jnp.dot(h.astype(w_ref.dtype), w_ref[...],
                      preferred_element_type=jnp.float32)
        acc = acc + b_ref[pl.ds(i, 1), 0:out_w]
        if i < len(w_refs) - 1:
            h = jnp.maximum(acc, 0.0)           # shared trunk + fused head L1
        else:
            out_ref[...] = acc.astype(out_ref.dtype)  # fused output layer


def init_ppo_params(key, obs_dim, action_dim, hidden_dim=256):
    """PyTorch-layout params (weight (out, in), bias (out,)) for all 7 Linears."""
    h, h2, h4 = hidden_dim, hidden_dim // 2, hidden_dim // 4
    layer_dims = [
        (h, obs_dim), (h, h), (h2, h),      # shared trunk
        (h4, h2), (action_dim, h4),         # policy head
        (h4, h2), (1, h4),                  # value head
    ]
    params = []
    for out_d, in_d in layer_dims:
        key, kw, kb = jax.random.split(key, 3)
        bound = 1.0 / (in_d ** 0.5)
        w = jax.random.uniform(kw, (out_d, in_d), jnp.float32, -bound, bound)
        b = jax.random.uniform(kb, (out_d,), jnp.float32, -bound, bound)
        params.append((w, b))
    return params


def prepare_ppo_params(params, obs_dim, action_dim, hidden_dim, *, use_bf16=True):
    """One-time packing of PyTorch-layout params into kernel operands.

    Head fusion, transposes, per-layer 128-padding and the bf16 cast all
    happen here (NOT per forward call).
    """
    h, h2, h4 = hidden_dim, hidden_dim // 2, hidden_dim // 4
    ((w1, b1), (w2, b2), (w3, b3),
     (pw1, pb1), (pw2, pb2),
     (vw1, vb1), (vw2, vb2)) = params

    # Fused first head layer: [pw1 || vw1]^T -> (h2, 2*h4)
    w4 = jnp.concatenate([pw1.T, vw1.T], axis=1)
    b4 = jnp.concatenate([pb1, vb1], axis=0)
    # Fused second head layer: block-diagonal -> one matmul yields [logits|value]
    w5 = jnp.zeros((2 * h4, action_dim + 1), jnp.float32)
    w5 = w5.at[:h4, :action_dim].set(pw2.T)
    w5 = w5.at[h4:, action_dim:].set(vw2.T)
    b5 = jnp.concatenate([pb2, vb2], axis=0)

    w_list = [w1.T, w2.T, w3.T, w4, w5]     # each (in, out)
    b_list = [b1, b2, b3, b4, b5]

    in_pads = [_round_up_128(w.shape[0]) for w in w_list]
    out_pads = [_round_up_128(w.shape[1]) for w in w_list]
    # Padded widths must chain layer-to-layer (out_i feeds in_{i+1}).
    assert all(out_pads[i] == in_pads[i + 1] for i in range(len(w_list) - 1))

    wdtype = jnp.bfloat16 if use_bf16 else jnp.float32

    def pad_w(w, ip, op):
        wp = jnp.zeros((ip, op), jnp.float32)
        wp = wp.at[: w.shape[0], : w.shape[1]].set(jnp.asarray(w, jnp.float32))
        return wp.astype(wdtype)

    weights = tuple(pad_w(w, ip, op)
                    for w, ip, op in zip(w_list, in_pads, out_pads))

    pb = max(out_pads)
    b_slab = jnp.zeros((8, pb), jnp.float32)          # 8 rows: sublane aligned
    for i, b in enumerate(b_list):
        b_slab = b_slab.at[i, : b.shape[0]].set(jnp.asarray(b, jnp.float32))

    return {
        "weights": weights,          # 5 per-layer padded weights (bf16/f32)
        "b_slab": b_slab,            # (8, Pb) f32 biases
        "obs_dim": obs_dim,
        "action_dim": action_dim,
        "in_pad": in_pads[0],
        "out_pad": out_pads[-1],
    }


def ppo_forward(x, packed, *, batch_tile=None):
    """Full PPONetwork forward in one Pallas call.

    Returns (policy_logits [B, action_dim], value [B, 1]).
    batch_tile: optional batch tile (multiple of 8, divides padded B).  For
    training-sized batches use a large tile (e.g. 256) so the grid has >= 2
    even "parallel" steps and v7x shards it across both TensorCores.
    """
    weights = packed["weights"]
    b_slab = packed["b_slab"]
    obs_dim = packed["obs_dim"]
    action_dim = packed["action_dim"]
    in_pad = packed["in_pad"]
    out_pad = packed["out_pad"]

    assert x.shape[-1] == obs_dim
    x = x.astype(jnp.float32)
    b_orig = x.shape[0]
    pad_rows = (-b_orig) % 8
    if pad_rows:
        x = jnp.pad(x, ((0, pad_rows), (0, 0)))
    B = x.shape[0]

    kernel = functools.partial(_ppo_fused_kernel, obs_dim=obs_dim)
    out_shape = jax.ShapeDtypeStruct((B, out_pad), jnp.float32)
    n_inputs = 1 + len(weights) + 1

    if batch_tile is None or batch_tile >= B:
        # Small-batch / inference: single invocation, everything VMEM-resident.
        vmem = pl.BlockSpec(memory_space=pltpu.MemorySpace.VMEM)
        out = pl.pallas_call(
            kernel,
            out_shape=out_shape,
            in_specs=[vmem] * n_inputs,
            out_specs=vmem,
            scratch_shapes=[pltpu.VMEM((B, in_pad), jnp.float32)],
        )(x, *weights, b_slab)
    else:
        assert B % batch_tile == 0 and batch_tile % 8 == 0, (
            "batch_tile must be a multiple of 8 that divides the padded batch")

        def const_spec(shape):
            return pl.BlockSpec(shape, lambda i, _s=shape: (0,) * len(_s))

        out = pl.pallas_call(
            kernel,
            out_shape=out_shape,
            grid=(B // batch_tile,),
            in_specs=[pl.BlockSpec((batch_tile, obs_dim), lambda i: (i, 0))]
                     + [const_spec(w.shape) for w in weights]
                     + [const_spec(b_slab.shape)],
            out_specs=pl.BlockSpec((batch_tile, out_pad), lambda i: (i, 0)),
            scratch_shapes=[pltpu.VMEM((batch_tile, in_pad), jnp.float32)],
            compiler_params=pltpu.CompilerParams(
                dimension_semantics=("parallel",)),
        )(x, *weights, b_slab)

    logits = out[:b_orig, :action_dim]
    value = out[:b_orig, action_dim:action_dim + 1]
    return logits, value


def ppo_forward_ref(x, params):
    """Pure-JAX f32 reference mirroring the PyTorch forward exactly."""
    def linear(a, w, b):
        return a @ w.T + b

    h = jax.nn.relu(linear(x, *params[0]))
    h = jax.nn.relu(linear(h, *params[1]))
    h = jax.nn.relu(linear(h, *params[2]))
    p = jax.nn.relu(linear(h, *params[3]))
    logits = linear(p, *params[4])
    v = jax.nn.relu(linear(h, *params[5]))
    value = linear(v, *params[6])
    return logits, value


def ppo_forward_bf16_ref(x, params):
    """Same network with bf16 matmul operands + f32 accumulation (mirrors kernel)."""
    def linear(a, w, b):
        return jnp.dot(a.astype(jnp.bfloat16), w.T.astype(jnp.bfloat16),
                       preferred_element_type=jnp.float32) + b

    h = jax.nn.relu(linear(x, *params[0]))
    h = jax.nn.relu(linear(h, *params[1]))
    h = jax.nn.relu(linear(h, *params[2]))
    p = jax.nn.relu(linear(h, *params[3]))
    logits = linear(p, *params[4])
    v = jax.nn.relu(linear(h, *params[5]))
    value = linear(v, *params[6])
    return logits, value


if __name__ == "__main__":
    key = jax.random.PRNGKey(0)
    k_params, k_x, k_xb = jax.random.split(key, 3)

    # Small, module-consistent shapes: Flappy-Bird-ish obs, 2 actions.
    batch = 8
    obs_dim = 8
    action_dim = 2
    hidden_dim = 32   # -> hidden//2 = 16, hidden//4 = 8

    params = init_ppo_params(k_params, obs_dim, action_dim, hidden_dim)
    packed_bf16 = prepare_ppo_params(params, obs_dim, action_dim, hidden_dim,
                                     use_bf16=True)
    packed_f32 = prepare_ppo_params(params, obs_dim, action_dim, hidden_dim,
                                    use_bf16=False)

    # --- inference path (no grid), bf16 MXU operands ---
    x = jax.random.normal(k_x, (batch, obs_dim), jnp.float32)
    logits, value = ppo_forward(x, packed_bf16)
    jax.block_until_ready((logits, value))
    assert logits.shape == (batch, action_dim)
    assert value.shape == (batch, 1)

    ref_l16, ref_v16 = ppo_forward_bf16_ref(x, params)   # structural check
    assert jnp.allclose(logits, ref_l16, atol=1e-3, rtol=1e-3)
    assert jnp.allclose(value, ref_v16, atol=1e-3, rtol=1e-3)
    ref_l, ref_v = ppo_forward_ref(x, params)             # vs f32 PyTorch math
    assert jnp.allclose(logits, ref_l, atol=5e-2, rtol=5e-2)
    assert jnp.allclose(value, ref_v, atol=5e-2, rtol=5e-2)

    # --- exact f32 parity path (use_bf16=False packing) ---
    logits32, value32 = ppo_forward(x, packed_f32)
    jax.block_until_ready((logits32, value32))
    assert jnp.allclose(logits32, ref_l, atol=1e-4, rtol=1e-4)
    assert jnp.allclose(value32, ref_v, atol=1e-4, rtol=1e-4)

    # --- training path: large batch tile, >=2 even "parallel" grid steps ---
    big_batch = 512
    xb = jax.random.normal(k_xb, (big_batch, obs_dim), jnp.float32)
    logits_b, value_b = ppo_forward(xb, packed_bf16, batch_tile=256)
    jax.block_until_ready((logits_b, value_b))
    assert logits_b.shape == (big_batch, action_dim)
    assert value_b.shape == (big_batch, 1)
    ref_lb16, ref_vb16 = ppo_forward_bf16_ref(xb, params)
    assert jnp.allclose(logits_b, ref_lb16, atol=1e-3, rtol=1e-3)
    assert jnp.allclose(value_b, ref_vb16, atol=1e-3, rtol=1e-3)

    print("KERNEL_OK")
</pallas_src>

<mosaic_0001>
module attributes {stable_mosaic.version = 11 : i64} {
  func.func @_ppo_fused_kernel(%arg0: memref<8x8xf32, #tpu.memory_space<vmem>>, %arg1: memref<128x128xbf16, #tpu.memory_space<vmem>>, %arg2: memref<128x128xbf16, #tpu.memory_space<vmem>>, %arg3: memref<128x128xbf16, #tpu.memory_space<vmem>>, %arg4: memref<128x128xbf16, #tpu.memory_space<vmem>>, %arg5: memref<128x128xbf16, #tpu.memory_space<vmem>>, %arg6: memref<8x128xf32, #tpu.memory_space<vmem>>, %arg7: memref<8x128xf32, #tpu.memory_space<vmem>>, %arg8: memref<8x128xf32, #tpu.memory_space<vmem>>) attributes {dimension_semantics = [], scalar_prefetch = 0 : i64, scratch_operands = 1 : i64, tpu.core_type = #tpu.core_type<tc>} {
    %cst = arith.constant 0.000000e+00 : f32
    %0 = vector.broadcast %cst : f32 to vector<8x128xf32>
    %c0 = arith.constant 0 : index
    %c0_0 = arith.constant 0 : index
    %1 = vector.load %arg8[%c0, %c0_0] : memref<8x128xf32, #tpu.memory_space<vmem>>, vector<8x128xf32>
    tpu.vector_store %arg8[%c0, %c0_0], %0 {strides = array<i32>} : memref<8x128xf32, #tpu.memory_space<vmem>>, vector<8x128xf32>,
    %c0_1 = arith.constant 0 : index
    %c0_2 = arith.constant 0 : index
    %2 = vector.load %arg0[%c0_1, %c0_2] : memref<8x8xf32, #tpu.memory_space<vmem>>, vector<8x8xf32>
    %c0_3 = arith.constant 0 : index
    %c0_4 = arith.constant 0 : index
    %3 = vector.load %arg8[%c0_3, %c0_4] : memref<8x128xf32, #tpu.memory_space<vmem>>, vector<8x8xf32>
    tpu.vector_store %arg8[%c0_3, %c0_4], %2 {strides = array<i32>} : memref<8x128xf32, #tpu.memory_space<vmem>>, vector<8x8xf32>,
    %c0_5 = arith.constant 0 : index
    %c0_6 = arith.constant 0 : index
    %4 = vector.load %arg8[%c0_5, %c0_6] : memref<8x128xf32, #tpu.memory_space<vmem>>, vector<8x128xf32>
    %5 = arith.truncf %4 : vector<8x128xf32> to vector<8x128xbf16>
    %c0_7 = arith.constant 0 : index
    %c0_8 = arith.constant 0 : index
    %6 = vector.load %arg1[%c0_7, %c0_8] : memref<128x128xbf16, #tpu.memory_space<vmem>>, vector<128x128xbf16>
    %cst_9 = arith.constant dense<0.000000e+00> : vector<8x128xf32>
    %7 = tpu.matmul %5, %6, %cst_9 {dimension_numbers = #tpu.dot_dimension_numbers<[1], [0], [0], [1], [0, 0, 1, 1], [], []>} : vector<8x128xbf16>, vector<128x128xbf16>, vector<8x128xf32> -> vector<8x128xf32>
    %c0_10 = arith.constant 0 : index
    %c0_11 = arith.constant 0 : index
    %8 = vector.load %arg6[%c0_10, %c0_11] : memref<8x128xf32, #tpu.memory_space<vmem>>, vector<1x128xf32>
    %9 = vector.broadcast %8 : vector<1x128xf32> to vector<8x128xf32>
    %10 = arith.addf %7, %9 : vector<8x128xf32>
    %cst_12 = arith.constant 0.000000e+00 : f32
    %11 = vector.broadcast %cst_12 : f32 to vector<8x128xf32>
    %12 = arith.maximumf %10, %11 : vector<8x128xf32>
    %13 = arith.truncf %12 : vector<8x128xf32> to vector<8x128xbf16>
    %c0_13 = arith.constant 0 : index
    %c0_14 = arith.constant 0 : index
    %14 = vector.load %arg2[%c0_13, %c0_14] : memref<128x128xbf16, #tpu.memory_space<vmem>>, vector<128x128xbf16>
    %cst_15 = arith.constant dense<0.000000e+00> : vector<8x128xf32>
    %15 = tpu.matmul %13, %14, %cst_15 {dimension_numbers = #tpu.dot_dimension_numbers<[1], [0], [0], [1], [0, 0, 1, 1], [], []>} : vector<8x128xbf16>, vector<128x128xbf16>, vector<8x128xf32> -> vector<8x128xf32>
    %c1 = arith.constant 1 : index
    %c0_16 = arith.constant 0 : index
    %16 = vector.load %arg6[%c1, %c0_16] : memref<8x128xf32, #tpu.memory_space<vmem>>, vector<1x128xf32>
    %17 = vector.broadcast %16 : vector<1x128xf32> to vector<8x128xf32>
    %18 = arith.addf %15, %17 : vector<8x128xf32>
    %cst_17 = arith.constant 0.000000e+00 : f32
    %19 = vector.broadcast %cst_17 : f32 to vector<8x128xf32>
    %20 = arith.maximumf %18, %19 : vector<8x128xf32>
    %21 = arith.truncf %20 : vector<8x128xf32> to vector<8x128xbf16>
    %c0_18 = arith.constant 0 : index
    %c0_19 = arith.constant 0 : index
    %22 = vector.load %arg3[%c0_18, %c0_19] : memref<128x128xbf16, #tpu.memory_space<vmem>>, vector<128x128xbf16>
    %cst_20 = arith.constant dense<0.000000e+00> : vector<8x128xf32>
    %23 = tpu.matmul %21, %22, %cst_20 {dimension_numbers = #tpu.dot_dimension_numbers<[1], [0], [0], [1], [0, 0, 1, 1], [], []>} : vector<8x128xbf16>, vector<128x128xbf16>, vector<8x128xf32> -> vector<8x128xf32>
    %c2 = arith.constant 2 : index
    %c0_21 = arith.constant 0 : index
    %24 = vector.load %arg6[%c2, %c0_21] : memref<8x128xf32, #tpu.memory_space<vmem>>, vector<1x128xf32>
    %25 = vector.broadcast %24 : vector<1x128xf32> to vector<8x128xf32>
    %26 = arith.addf %23, %25 : vector<8x128xf32>
    %cst_22 = arith.constant 0.000000e+00 : f32
    %27 = vector.broadcast %cst_22 : f32 to vector<8x128xf32>
    %28 = arith.maximumf %26, %27 : vector<8x128xf32>
    %29 = arith.truncf %28 : vector<8x128xf32> to vector<8x128xbf16>
    %c0_23 = arith.constant 0 : index
    %c0_24 = arith.constant 0 : index
    %30 = vector.load %arg4[%c0_23, %c0_24] : memref<128x128xbf16, #tpu.memory_space<vmem>>, vector<128x128xbf16>
    %cst_25 = arith.constant dense<0.000000e+00> : vector<8x128xf32>
    %31 = tpu.matmul %29, %30, %cst_25 {dimension_numbers = #tpu.dot_dimension_numbers<[1], [0], [0], [1], [0, 0, 1, 1], [], []>} : vector<8x128xbf16>, vector<128x128xbf16>, vector<8x128xf32> -> vector<8x128xf32>
    %c3 = arith.constant 3 : index
    %c0_26 = arith.constant 0 : index
    %32 = vector.load %arg6[%c3, %c0_26] : memref<8x128xf32, #tpu.memory_space<vmem>>, vector<1x128xf32>
    %33 = vector.broadcast %32 : vector<1x128xf32> to vector<8x128xf32>
    %34 = arith.addf %31, %33 : vector<8x128xf32>
    %cst_27 = arith.constant 0.000000e+00 : f32
    %35 = vector.broadcast %cst_27 : f32 to vector<8x128xf32>
    %36 = arith.maximumf %34, %35 : vector<8x128xf32>
    %37 = arith.truncf %36 : vector<8x128xf32> to vector<8x128xbf16>
    %c0_28 = arith.constant 0 : index
    %c0_29 = arith.constant 0 : index
    %38 = vector.load %arg5[%c0_28, %c0_29] : memref<128x128xbf16, #tpu.memory_space<vmem>>, vector<128x128xbf16>
    %cst_30 = arith.constant dense<0.000000e+00> : vector<8x128xf32>
    %39 = tpu.matmul %37, %38, %cst_30 {dimension_numbers = #tpu.dot_dimension_numbers<[1], [0], [0], [1], [0, 0, 1, 1], [], []>} : vector<8x128xbf16>, vector<128x128xbf16>, vector<8x128xf32> -> vector<8x128xf32>
    %c4 = arith.constant 4 : index
    %c0_31 = arith.constant 0 : index
    %40 = vector.load %arg6[%c4, %c0_31] : memref<8x128xf32, #tpu.memory_space<vmem>>, vector<1x128xf32>
    %41 = vector.broadcast %40 : vector<1x128xf32> to vector<8x128xf32>
    %42 = arith.addf %39, %41 : vector<8x128xf32>
    %c0_32 = arith.constant 0 : index
    %c0_33 = arith.constant 0 : index
    %43 = vector.load %arg7[%c0_32, %c0_33] : memref<8x128xf32, #tpu.memory_space<vmem>>, vector<8x128xf32>
    tpu.vector_store %arg7[%c0_32, %c0_33], %42 {strides = array<i32>} : memref<8x128xf32, #tpu.memory_space<vmem>>, vector<8x128xf32>,
    return
  }
}

</mosaic_0001>

<llo_original>
// kernel: tpu_custom_call.1
$region0: #{tpu_custom_call.1}
  #allocation0 [shape = 'u32[]', space=smem, size = 0x4, offset = 0x4, fixed_abs, tag = 'smem constant byte address 0x4 - core index']
  #allocation1 [shape = 'u32[144,128]{1,0:T(1,128)}', space=vmem, size = 0x12000, scoped, tag = 'internal scratch']
  #allocation2 [shape = 'f32[8,128]{1,0:T(8,128)}', space=vmem, size = 0x1000, scoped, tag = 'scratch operand']
  %s0 = inlined_call_operand.hbm [shape: f32[8,8], index: 0, kind: input, shape index: {}]
  %s1 = inlined_call_operand.hbm [shape: bf16[128,128], index: 1, kind: input, shape index: {}]
  %s2 = inlined_call_operand.hbm [shape: bf16[128,128], index: 2, kind: input, shape index: {}]
  %s3 = inlined_call_operand.hbm [shape: bf16[128,128], index: 3, kind: input, shape index: {}]
  %s4 = inlined_call_operand.hbm [shape: bf16[128,128], index: 4, kind: input, shape index: {}]
  %s5 = inlined_call_operand.hbm [shape: bf16[128,128], index: 5, kind: input, shape index: {}]
  %s6 = inlined_call_operand.vmem [shape: f32[8,128], index: 6, kind: input, shape index: {}]
  %s7 = inlined_call_operand.hbm [shape: f32[8,128], index: 7, kind: output, shape index: {}]
  %s8 = sld [smem:[#allocation0]]
  $region62: #{tpu_custom_call.1} parent=0
    _
  %s10 = ssub.s32 1, %s8
  %s11 = scalar_select 0, %s10, %s8
  $region1: #{tpu_custom_call.1} parent=0
    #allocation3 [shape = 'u8[4096]{0}', space=vmem, size = 0x1000, scoped, tag = 'input window, operand 0, single buffered']
    #allocation4 [shape = 's32[1]{0}', space=sflag, size = 0x4, scoped, tag = 'scoped memory for tpu_custom_call.1']
    #allocation5 [shape = 's32[1]{0}', space=sflag, size = 0x4, scoped, tag = 'scoped memory for tpu_custom_call.1']
    #allocation6 [shape = 'u8[32768]{0}', space=vmem, size = 0x8000, scoped, tag = 'input window, operand 1, single buffered']
    #allocation7 [shape = 's32[1]{0}', space=sflag, size = 0x4, scoped, tag = 'scoped memory for tpu_custom_call.1']
    #allocation8 [shape = 'u8[32768]{0}', space=vmem, size = 0x8000, scoped, tag = 'input window, operand 2, single buffered']
    #allocation9 [shape = 'u8[32768]{0}', space=vmem, size = 0x8000, scoped, tag = 'input window, operand 3, single buffered']
    #allocation10 [shape = 's32[1]{0}', space=sflag, size = 0x4, scoped, tag = 'scoped memory for tpu_custom_call.1']
    #allocation11 [shape = 'u8[32768]{0}', space=vmem, size = 0x8000, scoped, tag = 'input window, operand 4, single buffered']
    #allocation12 [shape = 'u8[32768]{0}', space=vmem, size = 0x8000, scoped, tag = 'input window, operand 5, single buffered']
    #allocation13 [shape = 's32[1]{0}', space=sflag, size = 0x4, scoped, tag = 'scoped memory for tpu_custom_call.1']
    #allocation14 [shape = 'u8[4096]{0}', space=vmem, size = 0x1000, scoped, tag = 'output window, operand 0, single buffered']
    %12 = vsyncpa [#allocation4], 0
    %13 = vsyncpa [#allocation7], 0
    %14 = vsyncpa [#allocation10], 0
    %15 = vsyncpa [#allocation13], 0
    %16 = vsyncpa [#allocation5], 0
    // Predicated region
    $region2: #{tpu_custom_call.1} parent=1 // pred_check
      _
    $region3: #{tpu_custom_call.1} parent=1 // pred_check_branch
      %18 = sbr.rel (0) target = $region5
    $region4: #{tpu_custom_call.1} parent=1 // pred_region
      %s20 = ssub.s32 128, 128
      %21 = vsyncadd [#allocation4], %s20
      %s23 = sshll.u32 [#allocation3], 4
      %s24 = int_to_ptr.vmem [resolvable:$true] %s23
      %26 = dma.hbm_to_vmem [thread:$0]  %s0, 128, %s24, [#allocation4]
    $region5: #{tpu_custom_call.1} parent=1 // pred_fallthru
      _
    // Predicated region
    $region6: #{tpu_custom_call.1} parent=1 // pred_check
      _
    $region7: #{tpu_custom_call.1} parent=1 // pred_check_branch
      %28 = sbr.rel (0) target = $region9
    $region8: #{tpu_custom_call.1} parent=1 // pred_region
      %s30 = ssub.s32 1024, 1024
      %31 = vsyncadd [#allocation7], %s30
      %s32 = sshll.u32 [#allocation6], 4
      %s33 = int_to_ptr.vmem [resolvable:$true] %s32
      %38 = dma.hbm_to_vmem [thread:$0]  %s1, 1024, %s33, [#allocation7], 64, 64, 4
    $region9: #{tpu_custom_call.1} parent=1 // pred_fallthru
      _
    // Predicated region
    $region10: #{tpu_custom_call.1} parent=1 // pred_check
      _
    $region11: #{tpu_custom_call.1} parent=1 // pred_check_branch
      %40 = sbr.rel (0) target = $region13
    $region12: #{tpu_custom_call.1} parent=1 // pred_region
      %s42 = ssub.s32 1024, 1024
      %43 = vsyncadd [#allocation7], %s42
      %s44 = sshll.u32 [#allocation8], 4
      %s45 = int_to_ptr.vmem [resolvable:$true] %s44
      %50 = dma.hbm_to_vmem [thread:$0]  %s2, 1024, %s45, [#allocation7], 64, 64, 4
    $region13: #{tpu_custom_call.1} parent=1 // pred_fallthru
      _
    // Predicated region
    $region14: #{tpu_custom_call.1} parent=1 // pred_check
      _
    $region15: #{tpu_custom_call.1} parent=1 // pred_check_branch
      %52 = sbr.rel (0) target = $region17
    $region16: #{tpu_custom_call.1} parent=1 // pred_region
      %s54 = ssub.s32 1024, 1024
      %55 = vsyncadd [#allocation10], %s54
      %s56 = sshll.u32 [#allocation9], 4
      %s57 = int_to_ptr.vmem [resolvable:$true] %s56
      %62 = dma.hbm_to_vmem [thread:$0]  %s3, 1024, %s57, [#allocation10], 64, 64, 4
    $region17: #{tpu_custom_call.1} parent=1 // pred_fallthru
      _
    // Predicated region
    $region18: #{tpu_custom_call.1} parent=1 // pred_check
      _
    $region19: #{tpu_custom_call.1} parent=1 // pred_check_branch
      %64 = sbr.rel (0) target = $region21
    $region20: #{tpu_custom_call.1} parent=1 // pred_region
      %s66 = ssub.s32 1024, 1024
      %67 = vsyncadd [#allocation10], %s66
      %s68 = sshll.u32 [#allocation11], 4
      %s69 = int_to_ptr.vmem [resolvable:$true] %s68
      %74 = dma.hbm_to_vmem [thread:$0]  %s4, 1024, %s69, [#allocation10], 64, 64, 4
    $region21: #{tpu_custom_call.1} parent=1 // pred_fallthru
      _
    // Predicated region
    $region22: #{tpu_custom_call.1} parent=1 // pred_check
      _
    $region23: #{tpu_custom_call.1} parent=1 // pred_check_branch
      %76 = sbr.rel (0) target = $region25
    $region24: #{tpu_custom_call.1} parent=1 // pred_region
      %s78 = ssub.s32 1024, 1024
      %79 = vsyncadd [#allocation13], %s78
      %s80 = sshll.u32 [#allocation12], 4
      %s81 = int_to_ptr.vmem [resolvable:$true] %s80
      %86 = dma.hbm_to_vmem [thread:$0]  %s5, 1024, %s81, [#allocation13], 64, 64, 4
    $region25: #{tpu_custom_call.1} parent=1 // pred_fallthru
      _
    // Predicated region
    $region26: #{tpu_custom_call.1} parent=1 // pred_check
      _
    $region27: #{tpu_custom_call.1} parent=1 // pred_check_branch
      %88 = sbr.rel (0) target = $region29
    $region28: #{tpu_custom_call.1} parent=1 // pred_region
      _
    $region29: #{tpu_custom_call.1} parent=1 // pred_fallthru
      _
    // Predicated region
    $region30: #{tpu_custom_call.1} parent=1 // pred_check
      _
    $region31: #{tpu_custom_call.1} parent=1 // pred_check_branch
      %90 = sbr.rel (0) target = $region33
    $region32: #{tpu_custom_call.1} parent=1 // pred_region
      %91 = dma.done [#allocation4], 128
    $region33: #{tpu_custom_call.1} parent=1 // pred_fallthru
      _
    // Predicated region
    $region34: #{tpu_custom_call.1} parent=1 // pred_check
      _
    $region35: #{tpu_custom_call.1} parent=1 // pred_check_branch
      %93 = sbr.rel (0) target = $region37
    $region36: #{tpu_custom_call.1} parent=1 // pred_region
      %94 = dma.done [#allocation7], 1024
    $region37: #{tpu_custom_call.1} parent=1 // pred_fallthru
      _
    // Predicated region
    $region38: #{tpu_custom_call.1} parent=1 // pred_check
      _
    $region39: #{tpu_custom_call.1} parent=1 // pred_check_branch
      %96 = sbr.rel (0) target = $region41
    $region40: #{tpu_custom_call.1} parent=1 // pred_region
      %97 = dma.done [#allocation7], 1024
    $region41: #{tpu_custom_call.1} parent=1 // pred_fallthru
      _
    // Predicated region
    $region42: #{tpu_custom_call.1} parent=1 // pred_check
      _
    $region43: #{tpu_custom_call.1} parent=1 // pred_check_branch
      %99 = sbr.rel (0) target = $region45
    $region44: #{tpu_custom_call.1} parent=1 // pred_region
      %100 = dma.done [#allocation10], 1024
    $region45: #{tpu_custom_call.1} parent=1 // pred_fallthru
      _
    // Predicated region
    $region46: #{tpu_custom_call.1} parent=1 // pred_check
      _
    $region47: #{tpu_custom_call.1} parent=1 // pred_check_branch
      %102 = sbr.rel (0) target = $region49
    $region48: #{tpu_custom_call.1} parent=1 // pred_region
      %103 = dma.done [#allocation10], 1024
    $region49: #{tpu_custom_call.1} parent=1 // pred_fallthru
      _
    // Predicated region
    $region50: #{tpu_custom_call.1} parent=1 // pred_check
      _
    $region51: #{tpu_custom_call.1} parent=1 // pred_check_branch
      %105 = sbr.rel (0) target = $region53
    $region52: #{tpu_custom_call.1} parent=1 // pred_region
      %106 = dma.done [#allocation13], 1024
    $region53: #{tpu_custom_call.1} parent=1 // pred_fallthru
      _
    %108 = vst [vmem:[#allocation2] sm:$0xff] 0.0
    %v109 = vld [vmem:[#allocation3] sm:$0xff]
    %vm110 = vcmask 64512
    %111 = vst.msk [vmem:[#allocation2] sm:$0xff] %vm110, %v109
    %v112 = vld [vmem:[#allocation2] sm:$0xff]
    %v113 = vpack.c.bf16 %v112, %v112
    %v114 = vld [vmem:[#allocation6] sm:$0xf]
    %v115 = vld [vmem:[#allocation6 + $0x4] sm:$0xf]
    %v116 = vld [vmem:[#allocation6 + $0x8] sm:$0xf]
    %v117 = vld [vmem:[#allocation6 + $0xc] sm:$0xf]
    %v118 = vld [vmem:[#allocation6 + $0x10] sm:$0xf]
    %v119 = vld [vmem:[#allocation6 + $0x14] sm:$0xf]
    %v120 = vld [vmem:[#allocation6 + $0x18] sm:$0xf]
    %v121 = vld [vmem:[#allocation6 + $0x1c] sm:$0xf]
    %v122 = vld [vmem:[#allocation6 + $0x20] sm:$0xf]
    %v123 = vld [vmem:[#allocation6 + $0x24] sm:$0xf]
    %v124 = vld [vmem:[#allocation6 + $0x28] sm:$0xf]
    %v125 = vld [vmem:[#allocation6 + $0x2c] sm:$0xf]
    %v126 = vld [vmem:[#allocation6 + $0x30] sm:$0xf]
    %v127 = vld [vmem:[#allocation6 + $0x34] sm:$0xf]
    %v128 = vld [vmem:[#allocation6 + $0x38] sm:$0xf]
    %v129 = vld [vmem:[#allocation6 + $0x3c] sm:$0xf]
    %v130 = vld [vmem:[%s6] sm:$0x1]
    %v131 = vlaneseq
    %v132 = vshrl.u32 %v131, 7
    %v133 = vsub.s32 0, %v132
    %v134 = vrot.slane %v130, %v133
    %v151 = vunpack.c.l.b16 %v114
    %v152 = vunpack.c.l.b16 %v115
    %v153 = vunpack.c.l.b16 %v116
    %v154 = vunpack.c.l.b16 %v117
    %v155 = vunpack.c.l.b16 %v118
    %v156 = vunpack.c.l.b16 %v119
    %v157 = vunpack.c.l.b16 %v120
    %v158 = vunpack.c.l.b16 %v121
    %v159 = vunpack.c.l.b16 %v122
    %v160 = vunpack.c.l.b16 %v123
    %v161 = vunpack.c.l.b16 %v124
    %v162 = vunpack.c.l.b16 %v125
    %v163 = vunpack.c.l.b16 %v126
    %v164 = vunpack.c.l.b16 %v127
    %v165 = vunpack.c.l.b16 %v128
    %v166 = vunpack.c.l.b16 %v129
    %v167 = vpack.c.b16 %v152, %v151
    %v168 = vpack.c.b16 %v154, %v153
    %v169 = vpack.c.b16 %v156, %v155
    %v170 = vpack.c.b16 %v158, %v157
    %v171 = vpack.c.b16 %v160, %v159
    %v172 = vpack.c.b16 %v162, %v161
    %v173 = vpack.c.b16 %v164, %v163
    %v174 = vpack.c.b16 %v166, %v165
    %183 = vmatprep.subr.bf16.mxu0 0
    %184 = vmatpush1.bf16.msra.mxu0 %v167
    %185 = vmatprep.subr.bf16.mxu0 0
    %186 = vmatpush1.bf16.msra.mxu0 %v168
    %187 = vmatprep.subr.bf16.mxu0 0
    %188 = vmatpush1.bf16.msra.mxu0 %v169
    %189 = vmatprep.subr.bf16.mxu0 0
    %190 = vmatpush1.bf16.msra.mxu0 %v170
    %191 = vmatprep.subr.bf16.mxu0 0
    %192 = vmatpush1.bf16.msra.mxu0 %v171
    %193 = vmatprep.subr.bf16.mxu0 0
    %194 = vmatpush1.bf16.msra.mxu0 %v172
    %195 = vmatprep.subr.bf16.mxu0 0
    %196 = vmatpush1.bf16.msra.mxu0 %v173
    %197 = vmatprep.subr.bf16.mxu0 0
    %198 = vmatpush1.bf16.msra.mxu0 %v174
    %199 = vmatprep.subr.bf16.mxu0 0
    %200 = vmatpush1.bf16.msra.mxu0 0
    %201 = vmatprep.subr.bf16.mxu0 0
    %202 = vmatpush1.bf16.msra.mxu0 0
    %203 = vmatprep.subr.bf16.mxu0 0
    %204 = vmatpush1.bf16.msra.mxu0 0
    %205 = vmatprep.subr.bf16.mxu0 0
    %206 = vmatpush1.bf16.msra.mxu0 0
    %207 = vmatprep.subr.bf16.mxu0 0
    %208 = vmatpush1.bf16.msra.mxu0 0
    %209 = vmatprep.subr.bf16.mxu0 0
    %210 = vmatpush1.bf16.msra.mxu0 0
    %211 = vmatprep.subr.bf16.mxu0 0
    %212 = vmatpush1.bf16.msra.mxu0 0
    %213 = vmatprep.subr.bf16.mxu0 0
    %214 = vmatpush1.bf16.msra.mxu0 0
    %215 = vmatprep.mubr.bf16.mxu0 0
    %216 = vmatmul.mubr.bf16.gmra.mrb[0].mxu0 %v113
    %v217 = vpop.f32.mrb[0].mxu0
    %v218 = vadd.f32 %v134, %v217
    %v219 = vpop.f32.mrb[0].mxu0
    %v220 = vpop.f32.mrb[0].mxu0
    %v221 = vpop.f32.mrb[0].mxu0
    %222 = vdwg.mxu0
    %v223 = vmax.f32 %v218, 0.0
    %v224 = vpack.c.bf16 %v223, %v223
    %v225 = vld [vmem:[#allocation8] sm:$0xf]
    %v226 = vld [vmem:[#allocation8 + $0x4] sm:$0xf]
    %v227 = vld [vmem:[#allocation8 + $0x8] sm:$0xf]
    %v228 = vld [vmem:[#allocation8 + $0xc] sm:$0xf]
    %v229 = vld [vmem:[#allocation8 + $0x10] sm:$0xf]
    %v230 = vld [vmem:[#allocation8 + $0x14] sm:$0xf]
    %v231 = vld [vmem:[#allocation8 + $0x18] sm:$0xf]
    %v232 = vld [vmem:[#allocation8 + $0x1c] sm:$0xf]
    %v233 = vld [vmem:[#allocation8 + $0x20] sm:$0xf]
    %v234 = vld [vmem:[#allocation8 + $0x24] sm:$0xf]
    %v235 = vld [vmem:[#allocation8 + $0x28] sm:$0xf]
    %v236 = vld [vmem:[#allocation8 + $0x2c] sm:$0xf]
    %v237 = vld [vmem:[#allocation8 + $0x30] sm:$0xf]
    %v238 = vld [vmem:[#allocation8 + $0x34] sm:$0xf]
    %v239 = vld [vmem:[#allocation8 + $0x38] sm:$0xf]
    %v240 = vld [vmem:[#allocation8 + $0x3c] sm:$0xf]
    %v241 = vld [vmem:[%s6 + $0x1] sm:$0x1]
    %v242 = vlaneseq
    %v243 = vshrl.u32 %v242, 7
    %v244 = vsub.s32 0, %v243
    %v245 = vrot.slane %v241, %v244
    %v262 = vunpack.c.l.b16 %v225
    %v263 = vunpack.c.l.b16 %v226
    %v264 = vunpack.c.l.b16 %v227
    %v265 = vunpack.c.l.b16 %v228
    %v266 = vunpack.c.l.b16 %v229
    %v267 = vunpack.c.l.b16 %v230
    %v268 = vunpack.c.l.b16 %v231
    %v269 = vunpack.c.l.b16 %v232
    %v270 = vunpack.c.l.b16 %v233
    %v271 = vunpack.c.l.b16 %v234
    %v272 = vunpack.c.l.b16 %v235
    %v273 = vunpack.c.l.b16 %v236
    %v274 = vunpack.c.l.b16 %v237
    %v275 = vunpack.c.l.b16 %v238
    %v276 = vunpack.c.l.b16 %v239
    %v277 = vunpack.c.l.b16 %v240
    %v278 = vpack.c.b16 %v263, %v262
    %v279 = vpack.c.b16 %v265, %v264
    %v280 = vpack.c.b16 %v267, %v266
    %v281 = vpack.c.b16 %v269, %v268
    %v282 = vpack.c.b16 %v271, %v270
    %v283 = vpack.c.b16 %v273, %v272
    %v284 = vpack.c.b16 %v275, %v274
    %v285 = vpack.c.b16 %v277, %v276
    %294 = vmatprep.subr.bf16.mxu0 0
    %295 = vmatpush1.bf16.msra.mxu0 %v278
    %296 = vmatprep.subr.bf16.mxu0 0
    %297 = vmatpush1.bf16.msra.mxu0 %v279
    %298 = vmatprep.subr.bf16.mxu0 0
    %299 = vmatpush1.bf16.msra.mxu0 %v280
    %300 = vmatprep.subr.bf16.mxu0 0
    %301 = vmatpush1.bf16.msra.mxu0 %v281
    %302 = vmatprep.subr.bf16.mxu0 0
    %303 = vmatpush1.bf16.msra.mxu0 %v282
    %304 = vmatprep.subr.bf16.mxu0 0
    %305 = vmatpush1.bf16.msra.mxu0 %v283
    %306 = vmatprep.subr.bf16.mxu0 0
    %307 = vmatpush1.bf16.msra.mxu0 %v284
    %308 = vmatprep.subr.bf16.mxu0 0
    %309 = vmatpush1.bf16.msra.mxu0 %v285
    %310 = vmatprep.subr.bf16.mxu0 0
    %311 = vmatpush1.bf16.msra.mxu0 0
    %312 = vmatprep.subr.bf16.mxu0 0
    %313 = vmatpush1.bf16.msra.mxu0 0
    %314 = vmatprep.subr.bf16.mxu0 0
    %315 = vmatpush1.bf16.msra.mxu0 0
    %316 = vmatprep.subr.bf16.mxu0 0
    %317 = vmatpush1.bf16.msra.mxu0 0
    %318 = vmatprep.subr.bf16.mxu0 0
    %319 = vmatpush1.bf16.msra.mxu0 0
    %320 = vmatprep.subr.bf16.mxu0 0
    %321 = vmatpush1.bf16.msra.mxu0 0
    %322 = vmatprep.subr.bf16.mxu0 0
    %323 = vmatpush1.bf16.msra.mxu0 0
    %324 = vmatprep.subr.bf16.mxu0 0
    %325 = vmatpush1.bf16.msra.mxu0 0
    %326 = vmatprep.mubr.bf16.mxu0 0
    %327 = vmatmul.mubr.bf16.gmra.mrb[0].mxu0 %v224
    %v328 = vpop.f32.mrb[0].mxu0
    %v329 = vadd.f32 %v245, %v328
    %v330 = vpop.f32.mrb[0].mxu0
    %v331 = vpop.f32.mrb[0].mxu0
    %v332 = vpop.f32.mrb[0].mxu0
    %333 = vdwg.mxu0
    %v334 = vmax.f32 %v329, 0.0
    %v335 = vpack.c.bf16 %v334, %v334
    %v336 = vld [vmem:[#allocation9] sm:$0xf]
    %v337 = vld [vmem:[#allocation9 + $0x4] sm:$0xf]
    %v338 = vld [vmem:[#allocation9 + $0x8] sm:$0xf]
    %v339 = vld [vmem:[#allocation9 + $0xc] sm:$0xf]
    %v340 = vld [vmem:[#allocation9 + $0x10] sm:$0xf]
    %v341 = vld [vmem:[#allocation9 + $0x14] sm:$0xf]
    %v342 = vld [vmem:[#allocation9 + $0x18] sm:$0xf]
    %v343 = vld [vmem:[#allocation9 + $0x1c] sm:$0xf]
    %v344 = vld [vmem:[#allocation9 + $0x20] sm:$0xf]
    %v345 = vld [vmem:[#allocation9 + $0x24] sm:$0xf]
    %v346 = vld [vmem:[#allocation9 + $0x28] sm:$0xf]
    %v347 = vld [vmem:[#allocation9 + $0x2c] sm:$0xf]
    %v348 = vld [vmem:[#allocation9 + $0x30] sm:$0xf]
    %v349 = vld [vmem:[#allocation9 + $0x34] sm:$0xf]
    %v350 = vld [vmem:[#allocation9 + $0x38] sm:$0xf]
    %v351 = vld [vmem:[#allocation9 + $0x3c] sm:$0xf]
    %v352 = vld [vmem:[%s6 + $0x2] sm:$0x1]
    %v353 = vlaneseq
    %v354 = vshrl.u32 %v353, 7
    %v355 = vsub.s32 0, %v354
    %v356 = vrot.slane %v352, %v355
    %v373 = vunpack.c.l.b16 %v336
    %v374 = vunpack.c.l.b16 %v337
    %v375 = vunpack.c.l.b16 %v338
    %v376 = vunpack.c.l.b16 %v339
    %v377 = vunpack.c.l.b16 %v340
    %v378 = vunpack.c.l.b16 %v341
    %v379 = vunpack.c.l.b16 %v342
    %v380 = vunpack.c.l.b16 %v343
    %v381 = vunpack.c.l.b16 %v344
    %v382 = vunpack.c.l.b16 %v345
    %v383 = vunpack.c.l.b16 %v346
    %v384 = vunpack.c.l.b16 %v347
    %v385 = vunpack.c.l.b16 %v348
    %v386 = vunpack.c.l.b16 %v349
    %v387 = vunpack.c.l.b16 %v350
    %v388 = vunpack.c.l.b16 %v351
    %v389 = vpack.c.b16 %v374, %v373
    %v390 = vpack.c.b16 %v376, %v375
    %v391 = vpack.c.b16 %v378, %v377
    %v392 = vpack.c.b16 %v380, %v379
    %v393 = vpack.c.b16 %v382, %v381
    %v394 = vpack.c.b16 %v384, %v383
    %v395 = vpack.c.b16 %v386, %v385
    %v396 = vpack.c.b16 %v388, %v387
    %405 = vmatprep.subr.bf16.mxu0 0
    %406 = vmatpush1.bf16.msra.mxu0 %v389
    %407 = vmatprep.subr.bf16.mxu0 0
    %408 = vmatpush1.bf16.msra.mxu0 %v390
    %409 = vmatprep.subr.bf16.mxu0 0
    %410 = vmatpush1.bf16.msra.mxu0 %v391
    %411 = vmatprep.subr.bf16.mxu0 0
    %412 = vmatpush1.bf16.msra.mxu0 %v392
    %413 = vmatprep.subr.bf16.mxu0 0
    %414 = vmatpush1.bf16.msra.mxu0 %v393
    %415 = vmatprep.subr.bf16.mxu0 0
    %416 = vmatpush1.bf16.msra.mxu0 %v394
    %417 = vmatprep.subr.bf16.mxu0 0
    %418 = vmatpush1.bf16.msra.mxu0 %v395
    %419 = vmatprep.subr.bf16.mxu0 0
    %420 = vmatpush1.bf16.msra.mxu0 %v396
    %421 = vmatprep.subr.bf16.mxu0 0
    %422 = vmatpush1.bf16.msra.mxu0 0
    %423 = vmatprep.subr.bf16.mxu0 0
    %424 = vmatpush1.bf16.msra.mxu0 0
    %425 = vmatprep.subr.bf16.mxu0 0
    %426 = vmatpush1.bf16.msra.mxu0 0
    %427 = vmatprep.subr.bf16.mxu0 0
    %428 = vmatpush1.bf16.msra.mxu0 0
    %429 = vmatprep.subr.bf16.mxu0 0
    %430 = vmatpush1.bf16.msra.mxu0 0
    %431 = vmatprep.subr.bf16.mxu0 0
    %432 = vmatpush1.bf16.msra.mxu0 0
    %433 = vmatprep.subr.bf16.mxu0 0
    %434 = vmatpush1.bf16.msra.mxu0 0
    %435 = vmatprep.subr.bf16.mxu0 0
    %436 = vmatpush1.bf16.msra.mxu0 0
    %437 = vmatprep.mubr.bf16.mxu0 0
    %438 = vmatmul.mubr.bf16.gmra.mrb[0].mxu0 %v335
    %v439 = vpop.f32.mrb[0].mxu0
    %v440 = vadd.f32 %v356, %v439
    %v441 = vpop.f32.mrb[0].mxu0
    %v442 = vpop.f32.mrb[0].mxu0
    %v443 = vpop.f32.mrb[0].mxu0
    %444 = vdwg.mxu0
    %v445 = vmax.f32 %v440, 0.0
    %v446 = vpack.c.bf16 %v445, %v445
    %v447 = vld [vmem:[#allocation11] sm:$0xf]
    %v448 = vld [vmem:[#allocation11 + $0x4] sm:$0xf]
    %v449 = vld [vmem:[#allocation11 + $0x8] sm:$0xf]
    %v450 = vld [vmem:[#allocation11 + $0xc] sm:$0xf]
    %v451 = vld [vmem:[#allocation11 + $0x10] sm:$0xf]
    %v452 = vld [vmem:[#allocation11 + $0x14] sm:$0xf]
    %v453 = vld [vmem:[#allocation11 + $0x18] sm:$0xf]
    %v454 = vld [vmem:[#allocation11 + $0x1c] sm:$0xf]
    %v455 = vld [vmem:[#allocation11 + $0x20] sm:$0xf]
    %v456 = vld [vmem:[#allocation11 + $0x24] sm:$0xf]
    %v457 = vld [vmem:[#allocation11 + $0x28] sm:$0xf]
    %v458 = vld [vmem:[#allocation11 + $0x2c] sm:$0xf]
    %v459 = vld [vmem:[#allocation11 + $0x30] sm:$0xf]
    %v460 = vld [vmem:[#allocation11 + $0x34] sm:$0xf]
    %v461 = vld [vmem:[#allocation11 + $0x38] sm:$0xf]
    %v462 = vld [vmem:[#allocation11 + $0x3c] sm:$0xf]
    %v463 = vld [vmem:[%s6 + $0x3] sm:$0x1]
    %v464 = vlaneseq
    %v465 = vshrl.u32 %v464, 7
    %v466 = vsub.s32 0, %v465
    %v467 = vrot.slane %v463, %v466
    %v484 = vunpack.c.l.b16 %v447
    %v485 = vunpack.c.l.b16 %v448
    %v486 = vunpack.c.l.b16 %v449
    %v487 = vunpack.c.l.b16 %v450
    %v488 = vunpack.c.l.b16 %v451
    %v489 = vunpack.c.l.b16 %v452
    %v490 = vunpack.c.l.b16 %v453
    %v491 = vunpack.c.l.b16 %v454
    %v492 = vunpack.c.l.b16 %v455
    %v493 = vunpack.c.l.b16 %v456
    %v494 = vunpack.c.l.b16 %v457
    %v495 = vunpack.c.l.b16 %v458
    %v496 = vunpack.c.l.b16 %v459
    %v497 = vunpack.c.l.b16 %v460
    %v498 = vunpack.c.l.b16 %v461
    %v499 = vunpack.c.l.b16 %v462
    %v500 = vpack.c.b16 %v485, %v484
    %v501 = vpack.c.b16 %v487, %v486
    %v502 = vpack.c.b16 %v489, %v488
    %v503 = vpack.c.b16 %v491, %v490
    %v504 = vpack.c.b16 %v493, %v492
    %v505 = vpack.c.b16 %v495, %v494
    %v506 = vpack.c.b16 %v497, %v496
    %v507 = vpack.c.b16 %v499, %v498
    %516 = vmatprep.subr.bf16.mxu0 0
    %517 = vmatpush1.bf16.msra.mxu0 %v500
    %518 = vmatprep.subr.bf16.mxu0 0
    %519 = vmatpush1.bf16.msra.mxu0 %v501
    %520 = vmatprep.subr.bf16.mxu0 0
    %521 = vmatpush1.bf16.msra.mxu0 %v502
    %522 = vmatprep.subr.bf16.mxu0 0
    %523 = vmatpush1.bf16.msra.mxu0 %v503
    %524 = vmatprep.subr.bf16.mxu0 0
    %525 = vmatpush1.bf16.msra.mxu0 %v504
    %526 = vmatprep.subr.bf16.mxu0 0
    %527 = vmatpush1.bf16.msra.mxu0 %v505
    %528 = vmatprep.subr.bf16.mxu0 0
    %529 = vmatpush1.bf16.msra.mxu0 %v506
    %530 = vmatprep.subr.bf16.mxu0 0
    %531 = vmatpush1.bf16.msra.mxu0 %v507
    %532 = vmatprep.subr.bf16.mxu0 0
    %533 = vmatpush1.bf16.msra.mxu0 0
    %534 = vmatprep.subr.bf16.mxu0 0
    %535 = vmatpush1.bf16.msra.mxu0 0
    %536 = vmatprep.subr.bf16.mxu0 0
    %537 = vmatpush1.bf16.msra.mxu0 0
    %538 = vmatprep.subr.bf16.mxu0 0
    %539 = vmatpush1.bf16.msra.mxu0 0
    %540 = vmatprep.subr.bf16.mxu0 0
    %541 = vmatpush1.bf16.msra.mxu0 0
    %542 = vmatprep.subr.bf16.mxu0 0
    %543 = vmatpush1.bf16.msra.mxu0 0
    %544 = vmatprep.subr.bf16.mxu0 0
    %545 = vmatpush1.bf16.msra.mxu0 0
    %546 = vmatprep.subr.bf16.mxu0 0
    %547 = vmatpush1.bf16.msra.mxu0 0
    %548 = vmatprep.mubr.bf16.mxu0 0
    %549 = vmatmul.mubr.bf16.gmra.mrb[0].mxu0 %v446
    %v550 = vpop.f32.mrb[0].mxu0
    %v551 = vadd.f32 %v467, %v550
    %v552 = vpop.f32.mrb[0].mxu0
    %v553 = vpop.f32.mrb[0].mxu0
    %v554 = vpop.f32.mrb[0].mxu0
    %555 = vdwg.mxu0
    %v556 = vmax.f32 %v551, 0.0
    %v557 = vpack.c.bf16 %v556, %v556
    %v558 = vld [vmem:[#allocation12] sm:$0xf]
    %v559 = vld [vmem:[#allocation12 + $0x4] sm:$0xf]
    %v560 = vld [vmem:[#allocation12 + $0x8] sm:$0xf]
    %v561 = vld [vmem:[#allocation12 + $0xc] sm:$0xf]
    %v562 = vld [vmem:[#allocation12 + $0x10] sm:$0xf]
    %v563 = vld [vmem:[#allocation12 + $0x14] sm:$0xf]
    %v564 = vld [vmem:[#allocation12 + $0x18] sm:$0xf]
    %v565 = vld [vmem:[#allocation12 + $0x1c] sm:$0xf]
    %v566 = vld [vmem:[#allocation12 + $0x20] sm:$0xf]
    %v567 = vld [vmem:[#allocation12 + $0x24] sm:$0xf]
    %v568 = vld [vmem:[#allocation12 + $0x28] sm:$0xf]
    %v569 = vld [vmem:[#allocation12 + $0x2c] sm:$0xf]
    %v570 = vld [vmem:[#allocation12 + $0x30] sm:$0xf]
    %v571 = vld [vmem:[#allocation12 + $0x34] sm:$0xf]
    %v572 = vld [vmem:[#allocation12 + $0x38] sm:$0xf]
    %v573 = vld [vmem:[#allocation12 + $0x3c] sm:$0xf]
    %v574 = vld [vmem:[%s6 + $0x4] sm:$0x1]
    %v575 = vlaneseq
    %v576 = vshrl.u32 %v575, 7
    %v577 = vsub.s32 0, %v576
    %v578 = vrot.slane %v574, %v577
    %v595 = vunpack.c.l.b16 %v558
    %v596 = vunpack.c.l.b16 %v559
    %v597 = vunpack.c.l.b16 %v560
    %v598 = vunpack.c.l.b16 %v561
    %v599 = vunpack.c.l.b16 %v562
    %v600 = vunpack.c.l.b16 %v563
    %v601 = vunpack.c.l.b16 %v564
    %v602 = vunpack.c.l.b16 %v565
    %v603 = vunpack.c.l.b16 %v566
    %v604 = vunpack.c.l.b16 %v567
    %v605 = vunpack.c.l.b16 %v568
    %v606 = vunpack.c.l.b16 %v569
    %v607 = vunpack.c.l.b16 %v570
    %v608 = vunpack.c.l.b16 %v571
    %v609 = vunpack.c.l.b16 %v572
    %v610 = vunpack.c.l.b16 %v573
    %v611 = vpack.c.b16 %v596, %v595
    %v612 = vpack.c.b16 %v598, %v597
    %v613 = vpack.c.b16 %v600, %v599
    %v614 = vpack.c.b16 %v602, %v601
    %v615 = vpack.c.b16 %v604, %v603
    %v616 = vpack.c.b16 %v606, %v605
    %v617 = vpack.c.b16 %v608, %v607
    %v618 = vpack.c.b16 %v610, %v609
    %627 = vmatprep.subr.bf16.mxu0 0
    %628 = vmatpush1.bf16.msra.mxu0 %v611
    %629 = vmatprep.subr.bf16.mxu0 0
    %630 = vmatpush1.bf16.msra.mxu0 %v612
    %631 = vmatprep.subr.bf16.mxu0 0
    %632 = vmatpush1.bf16.msra.mxu0 %v613
    %633 = vmatprep.subr.bf16.mxu0 0
    %634 = vmatpush1.bf16.msra.mxu0 %v614
    %635 = vmatprep.subr.bf16.mxu0 0
    %636 = vmatpush1.bf16.msra.mxu0 %v615
    %637 = vmatprep.subr.bf16.mxu0 0
    %638 = vmatpush1.bf16.msra.mxu0 %v616
    %639 = vmatprep.subr.bf16.mxu0 0
    %640 = vmatpush1.bf16.msra.mxu0 %v617
    %641 = vmatprep.subr.bf16.mxu0 0
    %642 = vmatpush1.bf16.msra.mxu0 %v618
    %643 = vmatprep.subr.bf16.mxu0 0
    %644 = vmatpush1.bf16.msra.mxu0 0
    %645 = vmatprep.subr.bf16.mxu0 0
    %646 = vmatpush1.bf16.msra.mxu0 0
    %647 = vmatprep.subr.bf16.mxu0 0
    %648 = vmatpush1.bf16.msra.mxu0 0
    %649 = vmatprep.subr.bf16.mxu0 0
    %650 = vmatpush1.bf16.msra.mxu0 0
    %651 = vmatprep.subr.bf16.mxu0 0
    %652 = vmatpush1.bf16.msra.mxu0 0
    %653 = vmatprep.subr.bf16.mxu0 0
    %654 = vmatpush1.bf16.msra.mxu0 0
    %655 = vmatprep.subr.bf16.mxu0 0
    %656 = vmatpush1.bf16.msra.mxu0 0
    %657 = vmatprep.subr.bf16.mxu0 0
    %658 = vmatpush1.bf16.msra.mxu0 0
    %659 = vmatprep.mubr.bf16.mxu0 0
    %660 = vmatmul.mubr.bf16.gmra.mrb[0].mxu0 %v557
    %v661 = vpop.f32.mrb[0].mxu0
    %v662 = vadd.f32 %v578, %v661
    %v663 = vpop.f32.mrb[0].mxu0
    %v664 = vpop.f32.mrb[0].mxu0
    %v665 = vpop.f32.mrb[0].mxu0
    %666 = vdwg.mxu0
    %667 = vst [vmem:[#allocation14] sm:$0xff] %v662
    // Predicated region
    $region54: #{tpu_custom_call.1} parent=1 // pred_check
      _
    $region55: #{tpu_custom_call.1} parent=1 // pred_check_branch
      %669 = sbr.rel (0) target = $region57
    $region56: #{tpu_custom_call.1} parent=1 // pred_region
      %s671 = ssub.s32 128, 128
      %672 = vsyncadd [#allocation5], %s671
      %s674 = sshll.u32 [#allocation14], 4
      %s675 = int_to_ptr.vmem [resolvable:$true] %s674
      %677 = dma.vmem_to_hbm [thread:$0]  %s675, 128, %s7, [#allocation5]
    $region57: #{tpu_custom_call.1} parent=1 // pred_fallthru
      _
    // Predicated region
    $region58: #{tpu_custom_call.1} parent=1 // pred_check
      _
    $region59: #{tpu_custom_call.1} parent=1 // pred_check_branch
      %679 = sbr.rel (0) target = $region61
    $region60: #{tpu_custom_call.1} parent=1 // pred_region
      %680 = dma.done [#allocation5], 128
    $region61: #{tpu_custom_call.1} parent=1 // pred_fallthru
      _
    %681 = vsyncpa [#allocation4], 1
    %682 = vsyncpa [#allocation7], 1
    %683 = vsyncpa [#allocation10], 1
    %684 = vsyncpa [#allocation13], 1
    %685 = vsyncpa [#allocation5], 1

</llo_original>
